<compile_context>
chip_gen: v7x
topology: tpu7x:2x2x1
jax: 0.10.0
libtpu: 0.0.40
codegen_flags: <defaults>
</compile_context>

<pallas_src>
import functools

import jax
import jax.numpy as jnp
from jax.experimental import pallas as pl
from jax.experimental.pallas import tpu as pltpu


_WHOLE_VMEM = pl.BlockSpec(memory_space=pltpu.MemorySpace.VMEM)


# ----------------------------------------------------------------------------
# Small helpers
# ----------------------------------------------------------------------------
def _round_up(a: int, m: int) -> int:
    return ((a + m - 1) // m) * m


def _vmem_limit_bytes() -> int:
    """Scoped VMEM limit with headroom, derived from the real chip capacity."""
    try:
        cap = int(getattr(pltpu.get_tpu_info(), "vmem_capacity_bytes", 64 << 20))
    except Exception:  # no TPU visible at trace time / interpret mode
        cap = 64 << 20  # v7x-safe default
    return int(min(cap * 3 // 4, 100 << 20))


def _pick_tiles(rows: int, cols: int, per_tile_bytes: int, *, itemsize: int = 4,
                max_tr: int = 512, two_row_blocks: bool = False):
    """Pick a (tr, tc) tile obeying the (8,128)-or-full-dim grain.

    Tiles do NOT need to divide (rows, cols): ragged edges are handled by
    cdiv grids (+ in-kernel masking where it matters), so tc never collapses
    to 128 on awkward H*W values.
    """
    if rows <= 8:
        tr = rows
    else:
        tr = min(max_tr, _round_up(rows, 8))
        if two_row_blocks and rows > 8:
            # Keep >= 2 row blocks so the 'parallel' row axis can shard across
            # both v7x TensorCores (harmless on single-TC chips).
            tr = min(tr, max(8, _round_up((rows + 1) // 2, 8)))
    if cols <= 128:
        tc = cols
    else:
        budget_cols = max(128, per_tile_bytes // (max(tr, 1) * itemsize))
        tc = min(_round_up(cols, 128), max(128, (budget_cols // 128) * 128))
    return tr, tc


# ----------------------------------------------------------------------------
# In-kernel squeeze-excite MLP (Linear -> ReLU -> Linear -> Sigmoid).
# Done with broadcast-multiply + reduce on the VPU: B/C/r are tiny, so the MXU
# would be wasted, and this keeps all values in the (batch, sublane=C, lane)
# layout with no in-kernel transpose/reshape relayouts.
# ----------------------------------------------------------------------------
def _se_gates(pooled_col, w1, w2t, b1, b2):
    """pooled_col: (B, C, 1); w1: (C, r); w2t = w2.T: (C, r);
    b1: (1, 1, r); b2: (1, C, 1)  ->  gates (B, C, 1)."""
    h = jnp.sum(pooled_col * w1[None], axis=1, keepdims=True) + b1      # (B, 1, r)
    h = jnp.maximum(h, 0.0)
    logits = jnp.sum(h * w2t[None], axis=2, keepdims=True) + b2        # (B, C, 1)
    return jax.nn.sigmoid(logits)                                       # exact sigmoid


# ----------------------------------------------------------------------------
# Kernels
# ----------------------------------------------------------------------------
def _fused_kernel(x_ref, w1_ref, w2t_ref, b1_ref, b2_ref, o_ref, *, inv_hw):
    """Single-pass pool + MLP + scale on a VMEM-resident (B, C, H*W) slab."""
    pooled = jnp.sum(x_ref[...].astype(jnp.float32), axis=-1, keepdims=True) * inv_hw
    gates = _se_gates(pooled, w1_ref[...], w2t_ref[...], b1_ref[...], b2_ref[...])
    o_ref[...] = (x_ref[...] * gates).astype(o_ref.dtype)


def _pool_kernel(x_ref, psum_ref, *, cols, tc, nk, inv_hw, needs_mask):
    """Pass 1: accumulate the spatial mean over the lane axis into (tr, 1)."""
    @pl.when(pl.program_id(2) == 0)
    def _init():
        psum_ref[...] = jnp.zeros_like(psum_ref)

    x = x_ref[...].astype(jnp.float32)
    if needs_mask:
        # Edge column blocks (and the occasional clamped duplicate block of the
        # split-accumulator decomposition) contain out-of-range lanes: zero them.
        col0 = (pl.program_id(1) * nk + pl.program_id(2)) * tc
        lane = jax.lax.broadcasted_iota(jnp.int32, (1, tc), 1)
        x = jnp.where(col0 + lane < cols, x, 0.0)
    psum_ref[...] += jnp.sum(x, axis=-1, keepdims=True) * inv_hw


def _se_mlp_kernel(p_ref, w1_ref, w2t_ref, b1_ref, b2_ref, o_ref):
    """Tiny squeeze-excite MLP on the pooled (B, C, 1) means."""
    o_ref[...] = _se_gates(p_ref[...], w1_ref[...], w2t_ref[...],
                           b1_ref[...], b2_ref[...])


def _scale_kernel(x_ref, g_ref, o_ref):
    """Pass 2: lane-dense broadcast multiply by the per-row gate column."""
    o_ref[...] = (x_ref[...] * g_ref[...]).astype(o_ref.dtype)


# ----------------------------------------------------------------------------
# Wrapper
# ----------------------------------------------------------------------------
def cellular_channel_attention(x, w1, b1, w2, b2, *, force_tiled=False,
                               tile_override=None):
    """x: (B, C, H, W); w1: (C, r); b1: (r,); w2: (r, C); b2: (C,)."""
    B, C, H, W = x.shape
    r = w1.shape[1]
    rows, cols = B * C, H * W
    inv_hw = 1.0 / float(cols)
    out_dtype = x.dtype
    itemsize = x.dtype.itemsize

    # Tiny parameter massaging (O(C*r) elements; negligible).
    w1f = w1.astype(jnp.float32)
    w2t = jnp.transpose(w2).astype(jnp.float32)           # (C, r)
    b1r = b1.astype(jnp.float32).reshape(1, 1, r)
    b2c = b2.astype(jnp.float32).reshape(1, C, 1)

    vmem_limit = _vmem_limit_bytes()

    # VMEM footprint of the whole slab at the (8, 128) layout grain.
    slab_bytes = B * _round_up(C, 8) * _round_up(cols, 128) * itemsize

    # ---- fused single-pass fast path (in + out + intermediates in VMEM) -----
    if not force_tiled and slab_bytes * 5 <= vmem_limit:
        x3d = x.reshape(B, C, cols)                        # free on NCHW
        y3d = pl.pallas_call(
            functools.partial(_fused_kernel, inv_hw=inv_hw),
            out_shape=jax.ShapeDtypeStruct((B, C, cols), out_dtype),
            in_specs=[_WHOLE_VMEM] * 5,
            out_specs=_WHOLE_VMEM,
            compiler_params=pltpu.CompilerParams(vmem_limit_bytes=vmem_limit),
        )(x3d, w1f, w2t, b1r, b2c)
        return y3d.reshape(B, C, H, W)

    # ---- tiled two-pass path -------------------------------------------------
    x2d = x.reshape(rows, cols)                            # free on NCHW

    # Pass 1: tiled global average pool. Only the input tile is large (the
    # accumulator is (tr, 1)); /8 of the limit leaves room for double buffering
    # and the masking intermediates while keeping multi-MiB DMAs.
    if tile_override is not None:
        tr1, tc1 = tile_override
    else:
        tr1, tc1 = _pick_tiles(rows, cols, vmem_limit // 8, itemsize=itemsize,
                               two_row_blocks=True)
    nr1 = pl.cdiv(rows, tr1)
    ncb = pl.cdiv(cols, tc1)
    if nr1 >= 2 or ncb < 2:
        n_splits, nk = 1, ncb
    else:
        # Single row block: split the column reduction into two parallel
        # partial accumulators so both v7x TensorCores get work.
        n_splits, nk = 2, pl.cdiv(ncb, 2)
    needs_mask = (cols % tc1 != 0) or (n_splits * nk != ncb)

    pooled_parts = pl.pallas_call(
        functools.partial(_pool_kernel, cols=cols, tc=tc1, nk=nk,
                          inv_hw=inv_hw, needs_mask=needs_mask),
        grid=(nr1, n_splits, nk),
        in_specs=[pl.BlockSpec(
            (tr1, tc1),
            lambda i, p, k: (i, jnp.minimum(p * nk + k, ncb - 1)))],
        out_specs=pl.BlockSpec((None, tr1, 1), lambda i, p, k: (p, i, 0)),
        out_shape=jax.ShapeDtypeStruct((n_splits, rows, 1), jnp.float32),
        compiler_params=pltpu.CompilerParams(
            dimension_semantics=("parallel", "parallel", "arbitrary"),
            vmem_limit_bytes=vmem_limit),
    )(x2d)

    # Combine the partial accumulators and view as (B, C, 1): O(B*C) floats.
    pooled_col = pooled_parts.sum(axis=0).reshape(B, C, 1)

    # Tiny squeeze-excite MLP (for large, tiled inputs its launch cost is noise;
    # small inputs never reach here thanks to the fused path).
    gates = pl.pallas_call(
        _se_mlp_kernel,
        out_shape=jax.ShapeDtypeStruct((B, C, 1), jnp.float32),
        in_specs=[_WHOLE_VMEM] * 5,
        out_specs=_WHOLE_VMEM,
        compiler_params=pltpu.CompilerParams(vmem_limit_bytes=vmem_limit),
    )(pooled_col, w1f, w2t, b1r, b2c)

    gate_col = gates.reshape(rows, 1)

    # Pass 2: tiled scale. Input + output tiles are double-buffered (4 large
    # buffers) plus the result value -> /6 of the limit per tile.
    if tile_override is not None:
        tr2, tc2 = tile_override
    else:
        tr2, tc2 = _pick_tiles(rows, cols, vmem_limit // 6, itemsize=itemsize)
    # TODO(synk): when the caller can donate x, add input_output_aliases={0: 0}
    # here to write y into x's HBM buffer and halve the peak HBM footprint.
    y2d = pl.pallas_call(
        _scale_kernel,
        grid=(pl.cdiv(rows, tr2), pl.cdiv(cols, tc2)),
        in_specs=[pl.BlockSpec((tr2, tc2), lambda i, j: (i, j)),
                  pl.BlockSpec((tr2, 1), lambda i, j: (i, 0))],
        out_specs=pl.BlockSpec((tr2, tc2), lambda i, j: (i, j)),
        out_shape=jax.ShapeDtypeStruct((rows, cols), out_dtype),
        compiler_params=pltpu.CompilerParams(
            dimension_semantics=("parallel", "parallel"),
            vmem_limit_bytes=vmem_limit),
    )(x2d, gate_col)

    return y2d.reshape(B, C, H, W)


# ----------------------------------------------------------------------------
# Reference + self-check
# ----------------------------------------------------------------------------
def _reference(x, w1, b1, w2, b2):
    pooled = jnp.mean(x, axis=(2, 3))
    h = jnp.maximum(pooled @ w1 + b1, 0.0)
    gates = jax.nn.sigmoid(h @ w2 + b2)
    return x * gates[:, :, None, None]


def _make_inputs(key, B, C, H, W, reduction_ratio=16):
    r = max(1, C // reduction_ratio)
    kx, k1, k2, k3, k4 = jax.random.split(key, 5)
    x = jax.random.normal(kx, (B, C, H, W), jnp.float32)
    w1 = 0.2 * jax.random.normal(k1, (C, r), jnp.float32)
    b1 = 0.1 * jax.random.normal(k2, (r,), jnp.float32)
    w2 = 0.2 * jax.random.normal(k3, (r, C), jnp.float32)
    b2 = 0.1 * jax.random.normal(k4, (C,), jnp.float32)
    return x, w1, b1, w2, b2


if __name__ == "__main__":
    key = jax.random.PRNGKey(0)

    checks = [
        # primary shape: fused single-pass path
        dict(shape=(2, 4, 16, 16), force_tiled=False, tile_override=None),
        # tiled path, aligned shapes, exercises the split pool accumulators
        dict(shape=(2, 4, 32, 32), force_tiled=True, tile_override=(8, 256)),
        # tiled path, ragged rows (B*C=12) and ragged cols (H*W=324): masked edges
        dict(shape=(3, 4, 18, 18), force_tiled=True, tile_override=(8, 256)),
    ]

    for cfg in checks:
        B, C, H, W = cfg["shape"]
        key, sub = jax.random.split(key)
        x, w1, b1, w2, b2 = _make_inputs(sub, B, C, H, W)
        fwd = jax.jit(functools.partial(cellular_channel_attention,
                                        force_tiled=cfg["force_tiled"],
                                        tile_override=cfg["tile_override"]))
        y = fwd(x, w1, b1, w2, b2)
        jax.block_until_ready(y)

        y_ref = _reference(x, w1, b1, w2, b2)
        assert y.shape == x.shape
        err = float(jnp.max(jnp.abs(y - y_ref)))
        assert err < 1e-4, f"shape {cfg['shape']}: max abs error {err}"

    print("KERNEL_OK")
</pallas_src>

<mosaic_0001>
module attributes {stable_mosaic.version = 11 : i64} {
  func.func @_fused_kernel(%arg0: memref<2x4x256xf32, #tpu.memory_space<vmem>>, %arg1: memref<4x1xf32, #tpu.memory_space<vmem>>, %arg2: memref<4x1xf32, #tpu.memory_space<vmem>>, %arg3: memref<1x1x1xf32, #tpu.memory_space<vmem>>, %arg4: memref<1x4x1xf32, #tpu.memory_space<vmem>>, %arg5: memref<2x4x256xf32, #tpu.memory_space<vmem>>) attributes {dimension_semantics = [], scalar_prefetch = 0 : i64, scratch_operands = 0 : i64, tpu.core_type = #tpu.core_type<tc>} {
    %c0 = arith.constant 0 : index
    %c0_0 = arith.constant 0 : index
    %c0_1 = arith.constant 0 : index
    %0 = vector.load %arg0[%c0, %c0_0, %c0_1] : memref<2x4x256xf32, #tpu.memory_space<vmem>>, vector<2x4x256xf32>
    %cst = arith.constant dense<0.000000e+00> : vector<2x4xf32>
    %1 = vector.multi_reduction <add>, %0, %cst [2] : vector<2x4x256xf32> to vector<2x4xf32>
    %2 = vector.shape_cast %1 : vector<2x4xf32> to vector<2x4x1xf32>
    %cst_2 = arith.constant 3.906250e-03 : f32
    %3 = vector.broadcast %cst_2 : f32 to vector<2x4x1xf32>
    %4 = arith.mulf %2, %3 : vector<2x4x1xf32>
    %c0_3 = arith.constant 0 : index
    %c0_4 = arith.constant 0 : index
    %5 = vector.load %arg1[%c0_3, %c0_4] : memref<4x1xf32, #tpu.memory_space<vmem>>, vector<4x1xf32>
    %c0_5 = arith.constant 0 : index
    %c0_6 = arith.constant 0 : index
    %6 = vector.load %arg2[%c0_5, %c0_6] : memref<4x1xf32, #tpu.memory_space<vmem>>, vector<4x1xf32>
    %c0_7 = arith.constant 0 : index
    %c0_8 = arith.constant 0 : index
    %c0_9 = arith.constant 0 : index
    %7 = vector.load %arg3[%c0_7, %c0_8, %c0_9] : memref<1x1x1xf32, #tpu.memory_space<vmem>>, vector<1x1x1xf32>
    %c0_10 = arith.constant 0 : index
    %c0_11 = arith.constant 0 : index
    %c0_12 = arith.constant 0 : index
    %8 = vector.load %arg4[%c0_10, %c0_11, %c0_12] : memref<1x4x1xf32, #tpu.memory_space<vmem>>, vector<1x4x1xf32>
    %9 = vector.shape_cast %5 : vector<4x1xf32> to vector<1x4x1xf32>
    %10 = vector.broadcast %9 : vector<1x4x1xf32> to vector<2x4x1xf32>
    %11 = arith.mulf %4, %10 : vector<2x4x1xf32>
    %cst_13 = arith.constant dense<0.000000e+00> : vector<2x1xf32>
    %12 = vector.multi_reduction <add>, %11, %cst_13 [1] : vector<2x4x1xf32> to vector<2x1xf32>
    %13 = vector.shape_cast %12 : vector<2x1xf32> to vector<2x1x1xf32>
    %14 = vector.broadcast %7 : vector<1x1x1xf32> to vector<2x1x1xf32>
    %15 = arith.addf %13, %14 : vector<2x1x1xf32>
    %cst_14 = arith.constant 0.000000e+00 : f32
    %16 = vector.broadcast %cst_14 : f32 to vector<2x1x1xf32>
    %17 = arith.maximumf %15, %16 : vector<2x1x1xf32>
    %18 = vector.shape_cast %6 : vector<4x1xf32> to vector<1x4x1xf32>
    %19 = vector.broadcast %17 : vector<2x1x1xf32> to vector<2x4x1xf32>
    %20 = vector.broadcast %18 : vector<1x4x1xf32> to vector<2x4x1xf32>
    %21 = arith.mulf %19, %20 : vector<2x4x1xf32>
    %cst_15 = arith.constant dense<0.000000e+00> : vector<2x4xf32>
    %22 = vector.multi_reduction <add>, %21, %cst_15 [2] : vector<2x4x1xf32> to vector<2x4xf32>
    %23 = vector.shape_cast %22 : vector<2x4xf32> to vector<2x4x1xf32>
    %24 = vector.broadcast %8 : vector<1x4x1xf32> to vector<2x4x1xf32>
    %25 = arith.addf %23, %24 : vector<2x4x1xf32>
    %26 = arith.negf %25 : vector<2x4x1xf32>
    %27 = math.exp %26 : vector<2x4x1xf32>
    %cst_16 = arith.constant 1.000000e+00 : f32
    %28 = vector.broadcast %cst_16 : f32 to vector<2x4x1xf32>
    %29 = arith.addf %28, %27 : vector<2x4x1xf32>
    %30 = arith.divf %28, %29 : vector<2x4x1xf32>
    %c0_17 = arith.constant 0 : index
    %c0_18 = arith.constant 0 : index
    %c0_19 = arith.constant 0 : index
    %31 = vector.load %arg0[%c0_17, %c0_18, %c0_19] : memref<2x4x256xf32, #tpu.memory_space<vmem>>, vector<2x4x256xf32>
    %32 = vector.broadcast %30 : vector<2x4x1xf32> to vector<2x4x256xf32>
    %33 = arith.mulf %31, %32 : vector<2x4x256xf32>
    %c0_20 = arith.constant 0 : index
    %c0_21 = arith.constant 0 : index
    %c0_22 = arith.constant 0 : index
    %34 = vector.load %arg5[%c0_20, %c0_21, %c0_22] : memref<2x4x256xf32, #tpu.memory_space<vmem>>, vector<2x4x256xf32>
    tpu.vector_store %arg5[%c0_20, %c0_21, %c0_22], %33 {strides = array<i32>} : memref<2x4x256xf32, #tpu.memory_space<vmem>>, vector<2x4x256xf32>,
    return
  }
}

</mosaic_0001>

<llo_original>
// kernel: cellular_channel_attention.1
$region0: #{cellular_channel_attention.1}
  #allocation0 [shape = 'u32[]', space=smem, size = 0x4, offset = 0x4, fixed_abs, tag = 'smem constant byte address 0x4 - core index']
  #allocation1 [shape = 'u32[144,128]{1,0:T(1,128)}', space=vmem, size = 0x12000, scoped, tag = 'internal scratch']
  #allocation2 [shape = 'f32[1,1,1]{2,1,0:T(1,128)S(1)}', space=vmem, size = 0x200, scoped, tag = 'scoped memory for cellular_channel_attention.1']
  %s0 = inlined_call_operand.vmem [shape: f32[2,4,256], index: 0, kind: input, shape index: {}]
  %s1 = inlined_call_operand.vmem [shape: f32[4,1], index: 1, kind: input, shape index: {}]
  %s2 = inlined_call_operand.vmem [shape: f32[4,1], index: 2, kind: input, shape index: {}]
  %s3 = inlined_call_operand.<no memory space> [shape: f32[1,1,1], index: 3, kind: input, shape index: {}]
  %s4 = inlined_call_operand.vmem [shape: f32[1,4,1], index: 4, kind: input, shape index: {}]
  %s5 = inlined_call_operand.vmem [shape: f32[2,4,256], index: 5, kind: output, shape index: {}]
  %s6 = sld [smem:[#allocation0]]
  $region30: #{cellular_channel_attention.1} parent=0
    _
  %s8 = ssub.s32 1, %s6
  %s9 = scalar_select 0, %s8, %s6
  %v10 = vstv %s3
  %11 = vst [vmem:[#allocation2] sm:$0x1] %v10
  // Predicated region
  $region2: #{cellular_channel_attention.1} parent=0 // pred_check
    _
  $region3: #{cellular_channel_attention.1} parent=0 // pred_check_branch
    %13 = sbr.rel (0) target = $region5
  $region4: #{cellular_channel_attention.1} parent=0 // pred_region
    _
  $region5: #{cellular_channel_attention.1} parent=0 // pred_fallthru
    _
  // Predicated region
  $region6: #{cellular_channel_attention.1} parent=0 // pred_check
    _
  $region7: #{cellular_channel_attention.1} parent=0 // pred_check_branch
    %15 = sbr.rel (0) target = $region9
  $region8: #{cellular_channel_attention.1} parent=0 // pred_region
    _
  $region9: #{cellular_channel_attention.1} parent=0 // pred_fallthru
    _
  // Predicated region
  $region10: #{cellular_channel_attention.1} parent=0 // pred_check
    _
  $region11: #{cellular_channel_attention.1} parent=0 // pred_check_branch
    %17 = sbr.rel (0) target = $region13
  $region12: #{cellular_channel_attention.1} parent=0 // pred_region
    _
  $region13: #{cellular_channel_attention.1} parent=0 // pred_fallthru
    _
  // Predicated region
  $region14: #{cellular_channel_attention.1} parent=0 // pred_check
    _
  $region15: #{cellular_channel_attention.1} parent=0 // pred_check_branch
    %19 = sbr.rel (0) target = $region17
  $region16: #{cellular_channel_attention.1} parent=0 // pred_region
    _
  $region17: #{cellular_channel_attention.1} parent=0 // pred_fallthru
    _
  // Predicated region
  $region18: #{cellular_channel_attention.1} parent=0 // pred_check
    _
  $region19: #{cellular_channel_attention.1} parent=0 // pred_check_branch
    %21 = sbr.rel (0) target = $region21
  $region20: #{cellular_channel_attention.1} parent=0 // pred_region
    _
  $region21: #{cellular_channel_attention.1} parent=0 // pred_fallthru
    _
  %v22 = vld [vmem:[%s0] sm:$0xff]
  %v23 = vld [vmem:[%s0 + $0x8] sm:$0xff]
  %v26 = vcombine.high %v22, %v22
  %v27 = vcombine.high %v23, %v23
  %vm30 = vcmask 1043456
  %v31 = vsel %vm30, %v22, 0.0
  %v32 = vsel %vm30, %v26, 0.0
  %v33 = vadd.f32 %v31, %v32
  %34 = vadd.xlane.f32.xlu0 %v33
  %v35 = vpop.xlane.xlu0 %34
  %v36 = vsel %vm30, %v23, 0.0
  %v37 = vsel %vm30, %v27, 0.0
  %v38 = vadd.f32 %v36, %v37
  %39 = vadd.xlane.f32.xlu0 %v38
  %v40 = vpop.xlane.xlu0 %39
  %v41 = vmul.f32 %v35, 0.00390625
  %v42 = vmul.f32 %v40, 0.00390625
  %v43 = vld [vmem:[%s1] sm:$0xf]
  %v44 = vld [vmem:[%s2] sm:$0xf]
  %v45 = vld [vmem:[#allocation2] sm:$0x1]
  %v46 = vld [vmem:[%s4] sm:$0xf]
  %v47 = vmul.f32 %v41, %v43
  %v48 = vmul.f32 %v42, %v43
  %vm49 = vcmask 3072
  %v50 = vsel %vm49, %v47, 0.0
  %v51 = vrot.slane %v50, 4
  %v52 = vadd.f32 %v50, %v51
  %v53 = vrot.slane %v52, 2
  %v54 = vadd.f32 %v52, %v53
  %v55 = vrot.slane %v54, 1
  %v56 = vadd.f32 %v54, %v55
  %v57 = vsel %vm49, %v48, 0.0
  %v58 = vrot.slane %v57, 4
  %v59 = vadd.f32 %v57, %v58
  %v60 = vrot.slane %v59, 2
  %v61 = vadd.f32 %v59, %v60
  %v62 = vrot.slane %v61, 1
  %v63 = vadd.f32 %v61, %v62
  %v64 = vadd.f32 %v56, %v45
  %v65 = vadd.f32 %v63, %v45
  %v66 = vmax.f32 %v64, 0.0
  %v67 = vmax.f32 %v65, 0.0
  %v68 = vlaneseq
  %v69 = vshrl.u32 %v68, 7
  %v70 = vsub.s32 0, %v69
  %v71 = vrot.slane %v66, %v70
  %v72 = vlaneseq
  %v73 = vshrl.u32 %v72, 7
  %v74 = vsub.s32 0, %v73
  %v75 = vrot.slane %v67, %v74
  %v76 = vmul.f32 %v71, %v44
  %v77 = vmul.f32 %v75, %v44
  %v78 = vadd.f32 %v76, 0.0
  %v79 = vadd.f32 %v77, 0.0
  %v80 = vadd.f32 %v78, %v46
  %v81 = vadd.f32 %v79, %v46
  %v82 = vxor.u32 %v80, 2147483648
  %v83 = vxor.u32 %v81, 2147483648
  %v84 = vmul.f32 %v82, 1.442695
  %v85 = vpow.pop %v84
  %v86 = vmul.f32 %v83, 1.442695
  %v87 = vpow.pop %v86
  %v88 = vadd.f32 %v85, 1.0
  %v89 = vadd.f32 %v87, 1.0
  %v90 = vrcp.pop %v88
  %v91 = vmul.f32 1.0, %v90
  %v92 = vrcp.pop %v89
  %v93 = vmul.f32 1.0, %v92
  %95 = vset.pattern.permute.xlu0 0
  %96 = vperm.xlu0 %95, %v91
  %v97 = vpop.permute.xlu0 %96
  %99 = vset.pattern.permute.xlu0 0
  %100 = vperm.xlu0 %99, %v93
  %v101 = vpop.permute.xlu0 %100
  %v103 = vunpack.c.l.s4 839922192
  %v104 = vunpack.c.0.s8 %v103
  %v105 = vlaneseq
  %v106 = vshrl.u32 %v105, 7
  %v107 = vsub.s32 %v104, %v106
  %v108 = vrot.slane %v97, %v107
  %v110 = vunpack.c.l.s4 839922192
  %v111 = vunpack.c.0.s8 %v110
  %v112 = vlaneseq
  %v113 = vshrl.u32 %v112, 7
  %v114 = vsub.s32 %v111, %v113
  %v115 = vrot.slane %v101, %v114
  %v118 = vmul.f32 %v22, %v108
  %v119 = vmul.f32 %v23, %v115
  %120 = vst [vmem:[%s5] sm:$0xff] %v118
  %121 = vst [vmem:[%s5 + $0x8] sm:$0xff] %v119
  // Predicated region
  $region22: #{cellular_channel_attention.1} parent=0 // pred_check
    _
  $region23: #{cellular_channel_attention.1} parent=0 // pred_check_branch
    %123 = sbr.rel (0) target = $region25
  $region24: #{cellular_channel_attention.1} parent=0 // pred_region
    _
  $region25: #{cellular_channel_attention.1} parent=0 // pred_fallthru
    _
  // Predicated region
  $region26: #{cellular_channel_attention.1} parent=0 // pred_check
    _
  $region27: #{cellular_channel_attention.1} parent=0 // pred_check_branch
    %125 = sbr.rel (0) target = $region29
  $region28: #{cellular_channel_attention.1} parent=0 // pred_region
    _
  $region29: #{cellular_channel_attention.1} parent=0 // pred_fallthru
    _

</llo_original>
